<compile_context>
chip_gen: v7x
topology: tpu7x:2x2x1
jax: 0.10.0
libtpu: 0.0.40
codegen_flags: <defaults>
</compile_context>

<pallas_src>
import jax
import jax.numpy as jnp
from jax.experimental import pallas as pl
from jax.experimental.pallas import tpu as pltpu

SMOOTH = 1e-05          # matches DiceBCELoss.smooth in the PyTorch module
_PAD_LOGIT = -100.0     # sigmoid/softplus of this is ~0 (or flushed to 0)


def _round_up(x, m):
    return ((x + m - 1) // m) * m


def _dice_bce_partials_kernel(x_ref, y_ref, out_ref):
    """Per-block partial sums for BCE-with-logits + Dice.

    x_ref, y_ref : (1, tile_rows, 128) logits / labels block
    out_ref      : (1, 1, 8, 128) stats block; sublane 0 = bce_sum,
                   sublane 1 = sum(p * y), sublane 2 = sum(p + y), rest 0.
    """
    x = x_ref[...].astype(jnp.float32)
    y = y_ref[...].astype(jnp.float32)

    # Share e = exp(-|x|) between the stable-BCE softplus and the sigmoid.
    e = jnp.exp(-jnp.abs(x))
    # BCEWithLogits: max(x, 0) - x*y + log(1 + exp(-|x|))
    bce = jnp.maximum(x, 0.0) - x * y + jnp.log1p(e)
    inv = 1.0 / (1.0 + e)
    p = jnp.where(x >= 0.0, inv, e * inv)          # == sigmoid(x)

    bce_s = jnp.sum(bce)
    inter_s = jnp.sum(p * y)
    den_s = jnp.sum(p + y)                         # one cross-lane reduce, not two

    row = jax.lax.broadcasted_iota(jnp.int32, (8, 128), 0)
    stats = jnp.where(row == 0, bce_s,
            jnp.where(row == 1, inter_s,
            jnp.where(row == 2, den_s, 0.0)))
    out_ref[0, 0] = stats


def dice_bce_loss(logits, labels, *, max_tile_rows=2048):
    """logits, labels: [B, 1, H, W] (NCHW). Returns scalar float32 loss."""
    B = logits.shape[0]
    x = jnp.squeeze(logits, axis=1).reshape(B, -1)      # (B, HW), native dtype
    y = jnp.squeeze(labels, axis=1).reshape(B, -1)      # (B, HW), native dtype
    hw = x.shape[1]

    rows = (hw + 127) // 128
    tile_rows = min(max_tile_rows, _round_up(rows, 8))  # multiple of 8, >= 8
    tile_elems = tile_rows * 128                        # lane-dense tile
    hw_pad = _round_up(hw, tile_elems)
    num_tiles = hw_pad // tile_elems
    rows_pad = hw_pad // 128

    if hw_pad != hw:
        pad = hw_pad - hw
        x = jnp.pad(x, ((0, 0), (0, pad)), constant_values=_PAD_LOGIT)
        y = jnp.pad(y, ((0, 0), (0, pad)), constant_values=0)

    x = x.reshape(B, rows_pad, 128)
    y = y.reshape(B, rows_pad, 128)

    partials = pl.pallas_call(
        _dice_bce_partials_kernel,
        out_shape=jax.ShapeDtypeStruct((B, num_tiles, 8, 128), jnp.float32),
        grid_spec=pltpu.PrefetchScalarGridSpec(
            num_scalar_prefetch=0,
            grid=(B, num_tiles),
            in_specs=[
                pl.BlockSpec((1, tile_rows, 128), lambda b, t: (b, t, 0)),
                pl.BlockSpec((1, tile_rows, 128), lambda b, t: (b, t, 0)),
            ],
            out_specs=pl.BlockSpec((1, 1, 8, 128), lambda b, t: (b, t, 0, 0)),
        ),
        compiler_params=pltpu.CompilerParams(
            dimension_semantics=("parallel", "parallel")),
    )(x, y)

    # Tiny final combine in plain JAX (per-block partials -> scalar loss).
    bce_sum = jnp.sum(partials[:, :, 0, 0])
    inter = jnp.sum(partials[:, :, 1, 0], axis=1)       # (B,)
    den = jnp.sum(partials[:, :, 2, 0], axis=1)         # (B,)

    bce = bce_sum / jnp.float32(B * hw)
    dice = jnp.mean(1.0 - (2.0 * inter + SMOOTH) / (den + SMOOTH))
    return bce + dice


def _reference(logits, labels):
    """Pure-JAX reference matching the PyTorch DiceBCELoss semantics."""
    x = jnp.squeeze(logits, axis=1).astype(jnp.float32)
    y = jnp.squeeze(labels, axis=1).astype(jnp.float32)
    bce = jnp.mean(jnp.maximum(x, 0.0) - x * y + jnp.log1p(jnp.exp(-jnp.abs(x))))
    p = jax.nn.sigmoid(x)
    inter = jnp.sum(p * y, axis=(1, 2))
    den = jnp.sum(p, axis=(1, 2)) + jnp.sum(y, axis=(1, 2))
    dice = jnp.mean(1.0 - (2.0 * inter + SMOOTH) / (den + SMOOTH))
    return bce + dice


if __name__ == "__main__":
    key = jax.random.PRNGKey(0)
    k1, k2 = jax.random.split(key)
    B, C, H, W = 2, 1, 16, 16
    logits = jax.random.normal(k1, (B, C, H, W), dtype=jnp.float32)
    mask = jax.random.uniform(k2, (B, C, H, W)) > 0.5
    labels = mask.astype(jnp.bfloat16)   # narrow label dtype over HBM (exact for 0/1)

    loss = dice_bce_loss(logits, labels)
    jax.block_until_ready(loss)

    ref = _reference(logits, mask.astype(jnp.float32))
    assert jnp.allclose(loss, ref, atol=1e-5, rtol=1e-5), (loss, ref)
    print("KERNEL_OK")
</pallas_src>

<mosaic_0001>
module attributes {stable_mosaic.version = 11 : i64} {
  func.func @_dice_bce_partials_kernel(%arg0: i32, %arg1: i32, %arg2: memref<1x8x128xf32, #tpu.memory_space<vmem>>, %arg3: memref<1x8x128xbf16, #tpu.memory_space<vmem>>, %arg4: memref<1x1x8x128xf32, #tpu.memory_space<vmem>>) attributes {dimension_semantics = [#tpu.dimension_semantics<parallel>, #tpu.dimension_semantics<parallel>], iteration_bounds = array<i64: 2, 1>, scalar_prefetch = 0 : i64, scratch_operands = 0 : i64, tpu.core_type = #tpu.core_type<tc>, window_params = [{transform_indices = @transform_0, window_bounds = array<i64: 1, 8, 128>}, {transform_indices = @transform_1, window_bounds = array<i64: 1, 8, 128>}, {transform_indices = @transform_2, window_bounds = array<i64: 1, 1, 8, 128>}]} {
    %c0 = arith.constant 0 : index
    %c0_0 = arith.constant 0 : index
    %c0_1 = arith.constant 0 : index
    %0 = vector.load %arg2[%c0, %c0_0, %c0_1] : memref<1x8x128xf32, #tpu.memory_space<vmem>>, vector<1x8x128xf32>
    %c0_2 = arith.constant 0 : index
    %c0_3 = arith.constant 0 : index
    %c0_4 = arith.constant 0 : index
    %1 = vector.load %arg3[%c0_2, %c0_3, %c0_4] : memref<1x8x128xbf16, #tpu.memory_space<vmem>>, vector<1x8x128xbf16>
    %2 = arith.extf %1 : vector<1x8x128xbf16> to vector<1x8x128xf32>
    %3 = math.absf %0 : vector<1x8x128xf32>
    %cst = arith.constant 0.000000e+00 : f32
    %4 = vector.broadcast %cst : f32 to vector<1x8x128xf32>
    %5 = arith.subf %4, %3 : vector<1x8x128xf32>
    %6 = math.exp %5 : vector<1x8x128xf32>
    %cst_5 = arith.constant 0.000000e+00 : f32
    %7 = vector.broadcast %cst_5 : f32 to vector<1x8x128xf32>
    %8 = arith.maximumf %0, %7 : vector<1x8x128xf32>
    %9 = arith.mulf %0, %2 : vector<1x8x128xf32>
    %10 = arith.subf %8, %9 : vector<1x8x128xf32>
    %11 = math.log1p %6 : vector<1x8x128xf32>
    %12 = arith.addf %10, %11 : vector<1x8x128xf32>
    %cst_6 = arith.constant 1.000000e+00 : f32
    %13 = vector.broadcast %cst_6 : f32 to vector<1x8x128xf32>
    %14 = arith.addf %13, %6 : vector<1x8x128xf32>
    %cst_7 = arith.constant 1.000000e+00 : f32
    %15 = vector.broadcast %cst_7 : f32 to vector<1x8x128xf32>
    %16 = arith.divf %15, %14 : vector<1x8x128xf32>
    %cst_8 = arith.constant 0.000000e+00 : f32
    %17 = vector.broadcast %cst_8 : f32 to vector<1x8x128xf32>
    %18 = arith.cmpf oge, %0, %17 : vector<1x8x128xf32>
    %19 = arith.mulf %6, %16 : vector<1x8x128xf32>
    %20 = arith.select %18, %16, %19 : vector<1x8x128xi1>, vector<1x8x128xf32>
    %21 = vector.shape_cast %12 : vector<1x8x128xf32> to vector<1x1x8x128xf32>
    %cst_9 = arith.constant dense<0.000000e+00> : vector<1xf32>
    %22 = vector.multi_reduction <add>, %21, %cst_9 [1, 2, 3] : vector<1x1x8x128xf32> to vector<1xf32>
    %23 = vector.shape_cast %22 : vector<1xf32> to vector<1x1x1x1xf32>
    %24 = vector.extract %23[0, 0, 0, 0] : f32 from vector<1x1x1x1xf32>
    %25 = arith.mulf %20, %2 : vector<1x8x128xf32>
    %26 = vector.shape_cast %25 : vector<1x8x128xf32> to vector<1x1x8x128xf32>
    %cst_10 = arith.constant dense<0.000000e+00> : vector<1xf32>
    %27 = vector.multi_reduction <add>, %26, %cst_10 [1, 2, 3] : vector<1x1x8x128xf32> to vector<1xf32>
    %28 = vector.shape_cast %27 : vector<1xf32> to vector<1x1x1x1xf32>
    %29 = vector.extract %28[0, 0, 0, 0] : f32 from vector<1x1x1x1xf32>
    %30 = arith.addf %20, %2 : vector<1x8x128xf32>
    %31 = vector.shape_cast %30 : vector<1x8x128xf32> to vector<1x1x8x128xf32>
    %cst_11 = arith.constant dense<0.000000e+00> : vector<1xf32>
    %32 = vector.multi_reduction <add>, %31, %cst_11 [1, 2, 3] : vector<1x1x8x128xf32> to vector<1xf32>
    %33 = vector.shape_cast %32 : vector<1xf32> to vector<1x1x1x1xf32>
    %34 = vector.extract %33[0, 0, 0, 0] : f32 from vector<1x1x1x1xf32>
    %35 = tpu.iota {dimensions = array<i32: 0>} : vector<8x128xi32>
    %c0_i32 = arith.constant 0 : i32
    %36 = vector.broadcast %c0_i32 : i32 to vector<8x128xi32>
    %37 = arith.cmpi eq, %35, %36 : vector<8x128xi32>
    %c1_i32 = arith.constant 1 : i32
    %38 = vector.broadcast %c1_i32 : i32 to vector<8x128xi32>
    %39 = arith.cmpi eq, %35, %38 : vector<8x128xi32>
    %c2_i32 = arith.constant 2 : i32
    %40 = vector.broadcast %c2_i32 : i32 to vector<8x128xi32>
    %41 = arith.cmpi eq, %35, %40 : vector<8x128xi32>
    %cst_12 = arith.constant 0.000000e+00 : f32
    %42 = vector.broadcast %34 : f32 to vector<8x128xf32>
    %43 = vector.broadcast %cst_12 : f32 to vector<8x128xf32>
    %44 = arith.select %41, %42, %43 : vector<8x128xi1>, vector<8x128xf32>
    %45 = vector.broadcast %29 : f32 to vector<8x128xf32>
    %46 = arith.select %39, %45, %44 : vector<8x128xi1>, vector<8x128xf32>
    %47 = vector.broadcast %24 : f32 to vector<8x128xf32>
    %48 = arith.select %37, %47, %46 : vector<8x128xi1>, vector<8x128xf32>
    %c0_13 = arith.constant 0 : index
    %c0_14 = arith.constant 0 : index
    %c0_15 = arith.constant 0 : index
    %c0_16 = arith.constant 0 : index
    %49 = vector.load %arg4[%c0_13, %c0_14, %c0_15, %c0_16] : memref<1x1x8x128xf32, #tpu.memory_space<vmem>>, vector<1x1x8x128xf32>
    %50 = vector.shape_cast %49 : vector<1x1x8x128xf32> to vector<8x128xf32>
    %51 = vector.shape_cast %48 : vector<8x128xf32> to vector<1x1x8x128xf32>
    tpu.vector_store %arg4[%c0_13, %c0_14, %c0_15, %c0_16], %51 {strides = array<i32>} : memref<1x1x8x128xf32, #tpu.memory_space<vmem>>, vector<1x1x8x128xf32>,
    return
  }
  func.func @transform_0(%arg0: i32, %arg1: i32) -> (i32, i32, i32) {
    %c0_i32 = arith.constant 0 : i32
    %c0_i32_0 = arith.constant 0 : i32
    return %arg0, %arg1, %c0_i32 : i32, i32, i32
  }
  func.func @transform_1(%arg0: i32, %arg1: i32) -> (i32, i32, i32) {
    %c0_i32 = arith.constant 0 : i32
    %c0_i32_0 = arith.constant 0 : i32
    return %arg0, %arg1, %c0_i32 : i32, i32, i32
  }
  func.func @transform_2(%arg0: i32, %arg1: i32) -> (i32, i32, i32, i32) {
    %c0_i32 = arith.constant 0 : i32
    %c0_i32_0 = arith.constant 0 : i32
    %c0_i32_1 = arith.constant 0 : i32
    return %arg0, %arg1, %c0_i32, %c0_i32_0 : i32, i32, i32, i32
  }
}

</mosaic_0001>

<llo_original>
// kernel: tpu_custom_call.1
$region0: #{tpu_custom_call.1}
  #allocation0 [shape = 'u32[]', space=smem, size = 0x4, offset = 0x4, fixed_abs, tag = 'smem constant byte address 0x4 - core index']
  #allocation1 [shape = 'u32[144,128]{1,0:T(1,128)}', space=vmem, size = 0x12000, scoped, tag = 'internal scratch']
  %s0 = inlined_call_operand.hbm [shape: f32[2,8,128], index: 0, kind: input, shape index: {}]
  %s1 = inlined_call_operand.hbm [shape: bf16[2,8,128], index: 1, kind: input, shape index: {}]
  %s2 = inlined_call_operand.hbm [shape: f32[2,1,8,128], index: 2, kind: output, shape index: {}]
  %s3 = sld [smem:[#allocation0]]
  $region49: #{tpu_custom_call.1} parent=0
    _
  %s5 = ssub.s32 1, %s3
  %s6 = scalar_select 0, %s5, %s3
  $region1: #{tpu_custom_call.1} parent=0
    #allocation2 [shape = 'u8[8192]{0}', space=vmem, size = 0x2000, scoped, tag = 'input window, operand 0']
    #allocation3 [shape = 's32[2]{0}', space=sflag, size = 0x8, scoped, tag = 'scoped memory for tpu_custom_call.1']
    #allocation4 [shape = 's32[2]{0}', space=sflag, size = 0x8, scoped, tag = 'scoped memory for tpu_custom_call.1']
    #allocation5 [shape = 'u8[4096]{0}', space=vmem, size = 0x1000, scoped, tag = 'input window, operand 1']
    #allocation6 [shape = 's32[2]{0}', space=sflag, size = 0x8, scoped, tag = 'scoped memory for tpu_custom_call.1']
    #allocation7 [shape = 'u8[8192]{0}', space=vmem, size = 0x2000, scoped, tag = 'output window, operand 0']
    %7 = vsyncpa [#allocation3], 0
    %s8 = scalar_lea.sflag [#allocation3], 1
    %9 = vsyncpa %s8, 0
    %10 = vsyncpa [#allocation6], 0
    %s11 = scalar_lea.sflag [#allocation6], 1
    %12 = vsyncpa %s11, 0
    %13 = vsyncpa [#allocation4], 0
    %s14 = scalar_lea.sflag [#allocation4], 1
    %15 = vsyncpa %s14, 0
    loop: start=0, step=1, limit=4
    $region2: #{tpu_custom_call.1} parent=1 // loop_pre_header
      _
    $region3: #{tpu_custom_call.1} parent=1 // loop_header
      %s17 = sphi 0, %s21
      %p18 = scmp.ge.s32.totalorder %s17, 4
      %s24 = sphi 0, %s36
      %s25 = sphi 0, %s32
      %s26 = sphi 0, %s24
      %s27 = sphi 0, %s25
      %s28 = sphi 0, %s26
      %s29 = sphi 0, %s27
      %s41 = sphi 0, %s43
      %s44 = sphi 0, %s41
      %s45 = sphi 0, %s44
      %s61 = sphi 0, %s45
      %s69 = sphi 0, %s71
      %s72 = sphi 0, %s69
      %s73 = sphi 0, %s72
      %s89 = sphi 0, %s73
      %s97 = sphi 0, %s99
      %s100 = sphi 0, %s97
      %s101 = sphi 0, %s100
      %s117 = sphi 0, %s101
    $region4: #{tpu_custom_call.1} parent=1 // loop_header_branch
      %20 = sbr.rel (%p18) target = $region8
    $region5: #{tpu_custom_call.1} parent=1 // loop_body
      %s22 = ssub.s32 %s17, 1
      %s23 = ssub.s32 %s17, 2
      %s30 = sadd.s32 1, %s25
      %p31 = scmp.ge.s32.totalorder %s30, 1
      %s32 = scalar_select %p31, 0, %s30
      %s33 = sadd.s32 1, %s24
      %s34 = scalar_select %p31, %s33, %s24
      %p35 = scmp.ge.s32.totalorder %s34, 2
      %s36 = scalar_select %p35, 0, %s34
      %s37 = ssub.s32 %s24, %s36
      %s38 = ssub.s32 %s25, %s32
      %s39 = sor.u32 %s37, %s38
      %p40 = scmp.eq.s32.totalorder %s39, 0
      %s42 = sadd.s32 %s41, 1
      %s43 = scalar_select %p40, %s41, %s42
      %p46 = pneg %p40
      %p47 = scmp.eq.s32.totalorder %s17, 1
      %p48 = por %p46, %p47
      %p49 = scmp.ne.s32.totalorder %s41, %s44
      %p50 = scmp.eq.s32.totalorder %s17, 0
      %p51 = por %p49, %p50
      %p52 = scmp.ne.s32.totalorder %s41, %s44
      %p53 = scmp.eq.s32.totalorder %s22, 1
      %p54 = por %p52, %p53
      %p55 = scmp.ne.s32.totalorder %s44, %s45
      %p56 = scmp.eq.s32.totalorder %s22, 0
      %p57 = por %p55, %p56
      %p58 = scmp.ne.s32.totalorder %s44, %s45
      %p59 = scmp.eq.s32.totalorder %s23, 1
      %p60 = por %p58, %p59
      %p62 = scmp.ne.s32.totalorder %s45, %s61
      %p63 = scmp.eq.s32.totalorder %s23, 0
      %p64 = por %p62, %p63
      %s65 = ssub.s32 %s24, %s36
      %s66 = ssub.s32 %s25, %s32
      %s67 = sor.u32 %s65, %s66
      %p68 = scmp.eq.s32.totalorder %s67, 0
      %s70 = sadd.s32 %s69, 1
      %s71 = scalar_select %p68, %s69, %s70
      %p74 = pneg %p68
      %p75 = scmp.eq.s32.totalorder %s17, 1
      %p76 = por %p74, %p75
      %p77 = scmp.ne.s32.totalorder %s69, %s72
      %p78 = scmp.eq.s32.totalorder %s17, 0
      %p79 = por %p77, %p78
      %p80 = scmp.ne.s32.totalorder %s69, %s72
      %p81 = scmp.eq.s32.totalorder %s22, 1
      %p82 = por %p80, %p81
      %p83 = scmp.ne.s32.totalorder %s72, %s73
      %p84 = scmp.eq.s32.totalorder %s22, 0
      %p85 = por %p83, %p84
      %p86 = scmp.ne.s32.totalorder %s72, %s73
      %p87 = scmp.eq.s32.totalorder %s23, 1
      %p88 = por %p86, %p87
      %p90 = scmp.ne.s32.totalorder %s73, %s89
      %p91 = scmp.eq.s32.totalorder %s23, 0
      %p92 = por %p90, %p91
      %s93 = ssub.s32 %s24, %s36
      %s94 = ssub.s32 %s25, %s32
      %s95 = sor.u32 %s93, %s94
      %p96 = scmp.eq.s32.totalorder %s95, 0
      %s98 = sadd.s32 %s97, 1
      %s99 = scalar_select %p96, %s97, %s98
      %p102 = pneg %p96
      %p103 = scmp.eq.s32.totalorder %s17, 1
      %p104 = por %p102, %p103
      %p105 = scmp.ne.s32.totalorder %s97, %s100
      %p106 = scmp.eq.s32.totalorder %s17, 0
      %p107 = por %p105, %p106
      %p108 = scmp.ne.s32.totalorder %s97, %s100
      %p109 = scmp.eq.s32.totalorder %s22, 1
      %p110 = por %p108, %p109
      %p111 = scmp.ne.s32.totalorder %s100, %s101
      %p112 = scmp.eq.s32.totalorder %s22, 0
      %p113 = por %p111, %p112
      %p114 = scmp.ne.s32.totalorder %s100, %s101
      %p115 = scmp.eq.s32.totalorder %s23, 1
      %p116 = por %p114, %p115
      %p118 = scmp.ne.s32.totalorder %s101, %s117
      %p119 = scmp.eq.s32.totalorder %s23, 0
      %p120 = por %p118, %p119
      %p121 = scmp.le.s32.totalorder 1, %s17
      %p122 = scmp.lt.s32.totalorder %s17, 3
      %p123 = pnand %p121, %p122
      %p124 = pneg %p123
      // Predicated region
      $region9: #{tpu_custom_call.1} parent=5 // pred_check
        _
      $region10: #{tpu_custom_call.1} parent=5 // pred_check_branch
        %126 = sbr.rel (%p123) target = $region12
      $region11: #{tpu_custom_call.1} parent=5 // pred_region
        %s127 = ssub.s32 %s17, 1
      $region12: #{tpu_custom_call.1} parent=5 // pred_fallthru
        _
      %p128 = scmp.lt.s32.totalorder %s17, 2
      // Predicated region
      $region13: #{tpu_custom_call.1} parent=5 // pred_check
        %p129 = pneg %p128
      $region14: #{tpu_custom_call.1} parent=5 // pred_check_branch
        %131 = sbr.rel (%p129) target = $region16
      $region15: #{tpu_custom_call.1} parent=5 // pred_region
        // Predicated region
        $region17: #{tpu_custom_call.1} parent=15 // pred_check
          %p132 = pneg %p51
        $region18: #{tpu_custom_call.1} parent=15 // pred_check_branch
          %134 = sbr.rel (%p132) target = $region20
        $region19: #{tpu_custom_call.1} parent=15 // pred_region
          %s135 = sand.u32 %s41, 1
          %s136 = scalar_lea.sflag [#allocation3], %s135
          %s137 = sand.u32 %s41, 1
          %s138 = smul.addr %s137, 8
          %s139 = scalar_lea.vmem [#allocation2], %s138
          %s141 = ssub.s32 128, 128
          %142 = vsyncadd %s136, %s141
          %s143 = sadd.s32 %s25, %s24
          %s144 = smul.addr %s143, 128
          %s145 = scalar_lea.hbm %s0, %s144
          %s147 = sshll.u32 %s139, 4
          %s148 = int_to_ptr.vmem [resolvable:$true] %s147
          %150 = dma.hbm_to_vmem [thread:$0]  %s145, 128, %s148, %s136
        $region20: #{tpu_custom_call.1} parent=15 // pred_fallthru
          _
        // Predicated region
        $region21: #{tpu_custom_call.1} parent=15 // pred_check
          %p151 = pneg %p79
        $region22: #{tpu_custom_call.1} parent=15 // pred_check_branch
          %153 = sbr.rel (%p151) target = $region24
        $region23: #{tpu_custom_call.1} parent=15 // pred_region
          %s154 = sand.u32 %s69, 1
          %s155 = scalar_lea.sflag [#allocation6], %s154
          %s156 = sand.u32 %s69, 1
          %s157 = smul.addr %s156, 4
          %s158 = scalar_lea.vmem [#allocation5], %s157
          %s160 = ssub.s32 64, 64
          %161 = vsyncadd %s155, %s160
          %s162 = sadd.s32 %s25, %s24
          %s163 = smul.addr %s162, 64
          %s164 = scalar_lea.hbm %s1, %s163
          %s166 = sshll.u32 %s158, 4
          %s167 = int_to_ptr.vmem [resolvable:$true] %s166
          %169 = dma.hbm_to_vmem [thread:$0]  %s164, 64, %s167, %s155
        $region24: #{tpu_custom_call.1} parent=15 // pred_fallthru
          _
      $region16: #{tpu_custom_call.1} parent=5 // pred_fallthru
        _
      %p170 = scmp.le.s32.totalorder 1, %s17
      %p171 = scmp.lt.s32.totalorder %s17, 3
      %p172 = pnand %p170, %p171
      %p173 = pneg %p172
      // Predicated region
      $region25: #{tpu_custom_call.1} parent=5 // pred_check
        _
      $region26: #{tpu_custom_call.1} parent=5 // pred_check_branch
        %175 = sbr.rel (%p172) target = $region28
      $region27: #{tpu_custom_call.1} parent=5 // pred_region
        %s176 = ssub.s32 %s17, 1
        %s177 = sand.u32 %s44, 1
        %s178 = scalar_lea.sflag [#allocation3], %s177
        %s179 = sand.u32 %s44, 1
        %s180 = smul.addr %s179, 8
        %s181 = scalar_lea.vmem [#allocation2], %s180
        // Predicated region
        $region29: #{tpu_custom_call.1} parent=27 // pred_check
          %p182 = pneg %p57
        $region30: #{tpu_custom_call.1} parent=27 // pred_check_branch
          %184 = sbr.rel (%p182) target = $region32
        $region31: #{tpu_custom_call.1} parent=27 // pred_region
          %185 = dma.done %s178, 128
        $region32: #{tpu_custom_call.1} parent=27 // pred_fallthru
          _
        %s186 = sand.u32 %s72, 1
        %s187 = scalar_lea.sflag [#allocation6], %s186
        %s188 = sand.u32 %s72, 1
        %s189 = smul.addr %s188, 4
        %s190 = scalar_lea.vmem [#allocation5], %s189
        // Predicated region
        $region33: #{tpu_custom_call.1} parent=27 // pred_check
          %p191 = pneg %p85
        $region34: #{tpu_custom_call.1} parent=27 // pred_check_branch
          %193 = sbr.rel (%p191) target = $region36
        $region35: #{tpu_custom_call.1} parent=27 // pred_region
          %194 = dma.done %s187, 64
        $region36: #{tpu_custom_call.1} parent=27 // pred_fallthru
          _
        %s195 = sand.u32 %s44, 1
        %s196 = scalar_lea.sflag [#allocation3], %s195
        %s197 = sand.u32 %s44, 1
        %s198 = smul.addr %s197, 8
        %s199 = scalar_lea.vmem [#allocation2], %s198
        %p200 = pneg %p57
        %p201 = pneg %p54
        %s202 = sand.u32 %s72, 1
        %s203 = scalar_lea.sflag [#allocation6], %s202
        %s204 = sand.u32 %s72, 1
        %s205 = smul.addr %s204, 4
        %s206 = scalar_lea.vmem [#allocation5], %s205
        %p207 = pneg %p85
        %p208 = pneg %p82
        %p209 = pneg %p113
        %p210 = pneg %p110
        %s211 = sand.u32 %s100, 1
        %s212 = scalar_lea.sflag [#allocation4], %s211
        %s213 = sand.u32 %s100, 1
        %s214 = smul.addr %s213, 8
        %s215 = scalar_lea.vmem [#allocation7], %s214
        %v216 = vld [vmem:[%s181] sm:$0xff]
        %v217 = vld [vmem:[%s190] sm:$0xf]
        %v218 = vunpack.c.l.bf16 %v217
        %v219 = vand.u32 2147483647, %v216
        %v220 = vsub.f32 0.0, %v219
        %v221 = vmul.f32 %v220, 1.442695
        %v222 = vpow.pop %v221
        %v223 = vmax.f32 %v216, 0.0
        %v224 = vmul.f32 %v216, %v218
        %v225 = vsub.f32 %v223, %v224
        %v226 = vadd.f32 %v222, 1.0
        %v227 = vlog2.pop %v226
        %v228 = vmul.f32 %v227, 0.6931472
        %v229 = vmul.f32 -0.5, %v222
        %v230 = vadd.f32 %v229, 1.0
        %v231 = vmul.f32 %v230, %v222
        %v232 = vand.u32 2147483647, %v222
        %vm233 = vcmp.lt.f32.partialorder %v232, 0.0004427343
        %v234 = vsel %vm233, %v231, %v228
        %v235 = vadd.f32 %v225, %v234
        %v236 = vadd.f32 %v222, 1.0
        %v237 = vrcp.pop %v236
        %v238 = vmul.f32 1.0, %v237
        %vm239 = vcmp.ge.f32.partialorder %v216, 0.0
        %v240 = vmul.f32 %v222, %v238
        %v241 = vsel %vm239, %v238, %v240
        %242 = vadd.xlane.f32.xlu0 %v235
        %v243 = vpop.xlane.xlu0 %242
        %v244 = vrot.slane %v243, 4
        %v245 = vadd.f32 %v243, %v244
        %v246 = vrot.slane %v245, 2
        %v247 = vadd.f32 %v245, %v246
        %v248 = vrot.slane %v247, 1
        %v249 = vadd.f32 %v247, %v248
        %s250 = vtos %v249
        %v251 = vmul.f32 %v241, %v218
        %252 = vadd.xlane.f32.xlu0 %v251
        %v253 = vpop.xlane.xlu0 %252
        %v254 = vrot.slane %v253, 4
        %v255 = vadd.f32 %v253, %v254
        %v256 = vrot.slane %v255, 2
        %v257 = vadd.f32 %v255, %v256
        %v258 = vrot.slane %v257, 1
        %v259 = vadd.f32 %v257, %v258
        %s260 = vtos %v259
        %v261 = vadd.f32 %v241, %v218
        %262 = vadd.xlane.f32.xlu0 %v261
        %v263 = vpop.xlane.xlu0 %262
        %v264 = vrot.slane %v263, 4
        %v265 = vadd.f32 %v263, %v264
        %v266 = vrot.slane %v265, 2
        %v267 = vadd.f32 %v265, %v266
        %v268 = vrot.slane %v267, 1
        %v269 = vadd.f32 %v267, %v268
        %s270 = vtos %v269
        %v271 = vlaneseq
        %v272 = vshrl.u32 %v271, 7
        %vm273 = vcmp.eq.s32.totalorder %v272, 0
        %vm274 = vcmp.eq.s32.totalorder %v272, 1
        %vm275 = vcmp.eq.s32.totalorder %v272, 2
        %v276 = vstv %s270
        %v277 = vsel %vm275, %v276, 0.0
        %v278 = vstv %s260
        %v279 = vsel %vm274, %v278, %v277
        %v280 = vstv %s250
        %v281 = vsel %vm273, %v280, %v279
        %282 = vst [vmem:[%s215] sm:$0xff] %v281
        %s283 = sand.u32 %s100, 1
        %s284 = scalar_lea.sflag [#allocation4], %s283
        %s285 = sand.u32 %s100, 1
        %s286 = smul.addr %s285, 8
        %s287 = scalar_lea.vmem [#allocation7], %s286
        // Predicated region
        $region37: #{tpu_custom_call.1} parent=27 // pred_check
          %p288 = pneg %p110
        $region38: #{tpu_custom_call.1} parent=27 // pred_check_branch
          %290 = sbr.rel (%p288) target = $region40
        $region39: #{tpu_custom_call.1} parent=27 // pred_region
          %s292 = ssub.s32 128, 128
          %293 = vsyncadd %s284, %s292
          %s294 = sadd.s32 %s27, %s26
          %s295 = smul.addr %s294, 128
          %s296 = scalar_lea.hbm %s2, %s295
          %s298 = sshll.u32 %s287, 4
          %s299 = int_to_ptr.vmem [resolvable:$true] %s298
          %301 = dma.vmem_to_hbm [thread:$0]  %s299, 128, %s296, %s284
        $region40: #{tpu_custom_call.1} parent=27 // pred_fallthru
          _
      $region28: #{tpu_custom_call.1} parent=5 // pred_fallthru
        _
      %p302 = scmp.le.s32.totalorder 2, %s17
      // Predicated region
      $region41: #{tpu_custom_call.1} parent=5 // pred_check
        %p303 = pneg %p302
      $region42: #{tpu_custom_call.1} parent=5 // pred_check_branch
        %305 = sbr.rel (%p303) target = $region44
      $region43: #{tpu_custom_call.1} parent=5 // pred_region
        %s306 = ssub.s32 %s17, 2
        // Predicated region
        $region45: #{tpu_custom_call.1} parent=43 // pred_check
          %p307 = pneg %p116
        $region46: #{tpu_custom_call.1} parent=43 // pred_check_branch
          %309 = sbr.rel (%p307) target = $region48
        $region47: #{tpu_custom_call.1} parent=43 // pred_region
          %s310 = sand.u32 %s101, 1
          %s311 = scalar_lea.sflag [#allocation4], %s310
          %s312 = sand.u32 %s101, 1
          %s313 = smul.addr %s312, 8
          %s314 = scalar_lea.vmem [#allocation7], %s313
          %315 = dma.done %s311, 128
        $region48: #{tpu_custom_call.1} parent=43 // pred_fallthru
          _
      $region44: #{tpu_custom_call.1} parent=5 // pred_fallthru
        _
    $region6: #{tpu_custom_call.1} parent=1 // loop_footer
      %s21 = sadd.s32 1, %s17
    $region7: #{tpu_custom_call.1} parent=1 // loop_footer_branch
      %16 = sbr.rel target = $region3
    $region8: #{tpu_custom_call.1} parent=1 // loop_exit
      _
    %316 = vsyncpa [#allocation3], 1
    %s317 = scalar_lea.sflag [#allocation3], 1
    %318 = vsyncpa %s317, 1
    %319 = vsyncpa [#allocation6], 1
    %s320 = scalar_lea.sflag [#allocation6], 1
    %321 = vsyncpa %s320, 1
    %322 = vsyncpa [#allocation4], 1
    %s323 = scalar_lea.sflag [#allocation4], 1
    %324 = vsyncpa %s323, 1

</llo_original>
